<compile_context>
chip_gen: v6e
topology: v6e:2x2x1
jax: 0.10.0
libtpu: 0.0.40
codegen_flags: <defaults>
</compile_context>

<pallas_src>
import jax
import jax.numpy as jnp
from jax import lax
from jax.experimental import pallas as pl
from jax.experimental.pallas import tpu as pltpu


def _mlp_kernel(x_ref, w_ref, b_ref, o_ref):
    # x_ref: (1, C, tile_s)  activation block in native NCHW-derived layout
    # w_ref: (C, E)          bf16 weight (pre-transposed from torch (E, C))
    # b_ref: (1, E)          f32 bias
    # o_ref: (1, tile_s*E//128, 128) lane-dense, or (1, tile_s, E) fallback
    x = x_ref[0].astype(jnp.bfloat16)                 # cast BEFORE any relayout
    # Single MXU contraction over C; the (C, tile_s) LHS is consumed natively
    # as a transposed-LHS dot -- no explicit transpose / concatenate needed.
    y = lax.dot_general(
        x, w_ref[...],
        dimension_numbers=(((0,), (0,)), ((), ())),
        preferred_element_type=jnp.float32)           # (tile_s, E), f32 acc
    y = y + b_ref[...]                                # f32 bias add
    # Repack to the output block shape (lane-dense when possible) so the final
    # vector stores are unmasked; the relayout rides the otherwise-idle XLU.
    o_ref[...] = y.astype(o_ref.dtype).reshape(o_ref.shape)


def _round_up(x, m):
    return (x + m - 1) // m * m


def _mlp_forward_impl(x_nchw, weight, bias, *, tile_s_max, lane_dense):
    B, C, H, W = x_nchw.shape
    E = weight.shape[0]
    S = H * W

    # Free reshape (no data movement): NCHW -> (B, C, S). The NCHW->NSC layout
    # change happens implicitly inside the kernel's dot_general.
    x_bcs = x_nchw.reshape(B, C, S)
    w_ce = weight.T.astype(jnp.bfloat16)             # (C, E), params cast once
    b_1e = bias.reshape(1, E).astype(jnp.float32)    # (1, E)

    # S tile: lane-aligned multiple of 128, as large as the VMEM budget allows
    # (amortizes ~0.35 us per grid step against HBM bandwidth).
    budget = 32 * 1024 * 1024                        # streamed-block budget
    row_bytes = 8 * (C + E)                          # 2x-buffered f32 in + out per row
    cap = max(128, (budget // row_bytes) // 128 * 128)
    tile_s = min(tile_s_max, cap, _round_up(S, 128))
    S_pad = _round_up(S, tile_s)
    if S_pad != S:
        # Pad instead of a whole-S block: keeps 128-aligned tiles + pipelining.
        x_bcs = jnp.pad(x_bcs, ((0, 0), (0, 0), (0, S_pad - S)))
    n_s = S_pad // tile_s

    # Lane-dense packed output needs the block's sublane dim to be a multiple
    # of 8, i.e. tile_s*E % 1024 == 0 (always true when E % 8 == 0).
    lane_dense = lane_dense and (tile_s * E) % 1024 == 0
    if lane_dense:
        out_shape = jax.ShapeDtypeStruct((B, S_pad * E // 128, 128), x_nchw.dtype)
        out_spec = pl.BlockSpec((1, tile_s * E // 128, 128),
                                lambda b, s: (b, s, 0))
    else:
        out_shape = jax.ShapeDtypeStruct((B, S_pad, E), x_nchw.dtype)
        out_spec = pl.BlockSpec((1, tile_s, E), lambda b, s: (b, s, 0))

    out = pl.pallas_call(
        _mlp_kernel,
        out_shape=out_shape,
        grid_spec=pltpu.PrefetchScalarGridSpec(
            num_scalar_prefetch=0,
            grid=(B, n_s),
            in_specs=[
                pl.BlockSpec((1, C, tile_s), lambda b, s: (b, 0, s)),
                pl.BlockSpec((C, E), lambda b, s: (0, 0)),
                pl.BlockSpec((1, E), lambda b, s: (0, 0)),
            ],
            out_specs=out_spec,
        ),
        compiler_params=pltpu.CompilerParams(
            dimension_semantics=("parallel", "parallel"),
            vmem_limit_bytes=48 * 1024 * 1024,
        ),
    )(x_bcs, w_ce, b_1e)

    out = out.reshape(B, S_pad, E)   # row-major repack; free for lane-dense path
    if S_pad != S:
        out = out[:, :S, :]
    return out


def mlp_forward(x_nchw, weight, bias, *, tile_s_max=4096):
    """Pallas equivalent of MLP.forward. Returns (B, H*W, E)."""
    try:
        return _mlp_forward_impl(x_nchw, weight, bias,
                                 tile_s_max=tile_s_max, lane_dense=True)
    except Exception:
        # TODO(synk): drop this fallback once the in-kernel (tile_s, E) ->
        # (tile_s*E/128, 128) relayout is guaranteed by the installed Mosaic.
        return _mlp_forward_impl(x_nchw, weight, bias,
                                 tile_s_max=tile_s_max, lane_dense=False)


if __name__ == "__main__":
    # Small shapes consistent with the module: input_dim=C=64, embed_dim=E=32.
    B, C, H, W = 2, 64, 16, 16
    E = 32

    key = jax.random.PRNGKey(0)
    kx, kw, kb = jax.random.split(key, 3)

    x = jax.random.normal(kx, (B, C, H, W), dtype=jnp.float32)
    bound = 1.0 / (C ** 0.5)
    weight = jax.random.uniform(kw, (E, C), minval=-bound, maxval=bound,
                                dtype=jnp.float32)
    bias = jax.random.uniform(kb, (E,), minval=-bound, maxval=bound,
                              dtype=jnp.float32)

    out = jax.block_until_ready(mlp_forward(x, weight, bias))

    # Reference check (pure JAX, f32). Kernel uses bf16 MXU inputs with f32
    # accumulation, so allow a proportionate tolerance.
    S = H * W
    ref = jnp.einsum("bcs,ec->bse", x.reshape(B, C, S), weight) + bias
    assert out.shape == (B, S, E)
    assert jnp.allclose(out, ref, atol=3e-2, rtol=3e-2), float(
        jnp.max(jnp.abs(out - ref)))

    print("KERNEL_OK")
</pallas_src>

<mosaic_0001>
module attributes {stable_mosaic.version = 11 : i64} {
  func.func @_mlp_kernel(%arg0: i32, %arg1: i32, %arg2: memref<1x64x256xf32, #tpu.memory_space<vmem>>, %arg3: memref<64x32xbf16, #tpu.memory_space<vmem>>, %arg4: memref<1x32xf32, #tpu.memory_space<vmem>>, %arg5: memref<1x64x128xf32, #tpu.memory_space<vmem>>) attributes {dimension_semantics = [#tpu.dimension_semantics<parallel>, #tpu.dimension_semantics<parallel>], iteration_bounds = array<i64: 2, 1>, scalar_prefetch = 0 : i64, scratch_operands = 0 : i64, tpu.core_type = #tpu.core_type<tc>, window_params = [{transform_indices = @transform_0, window_bounds = array<i64: 1, 64, 256>}, {pipeline_mode = #tpu.pipeline_mode<synchronous>, transform_indices = @transform_1, window_bounds = array<i64: 64, 32>}, {pipeline_mode = #tpu.pipeline_mode<synchronous>, transform_indices = @transform_2, window_bounds = array<i64: 1, 32>}, {transform_indices = @transform_3, window_bounds = array<i64: 1, 64, 128>}]} {
    %c0 = arith.constant 0 : index
    %c0_0 = arith.constant 0 : index
    %c0_1 = arith.constant 0 : index
    %0 = vector.load %arg2[%c0, %c0_0, %c0_1] : memref<1x64x256xf32, #tpu.memory_space<vmem>>, vector<1x64x256xf32>
    %1 = vector.shape_cast %0 : vector<1x64x256xf32> to vector<64x256xf32>
    %2 = arith.truncf %1 : vector<64x256xf32> to vector<64x256xbf16>
    %c0_2 = arith.constant 0 : index
    %c0_3 = arith.constant 0 : index
    %3 = vector.load %arg3[%c0_2, %c0_3] : memref<64x32xbf16, #tpu.memory_space<vmem>>, vector<64x32xbf16>
    %cst = arith.constant dense<0.000000e+00> : vector<256x32xf32>
    %4 = tpu.matmul %2, %3, %cst {dimension_numbers = #tpu.dot_dimension_numbers<[0], [0], [1], [1], [0, 1, 1, 1], [], []>} : vector<64x256xbf16>, vector<64x32xbf16>, vector<256x32xf32> -> vector<256x32xf32>
    %c0_4 = arith.constant 0 : index
    %c0_5 = arith.constant 0 : index
    %5 = vector.load %arg4[%c0_4, %c0_5] : memref<1x32xf32, #tpu.memory_space<vmem>>, vector<1x32xf32>
    %6 = vector.broadcast %5 : vector<1x32xf32> to vector<256x32xf32>
    %7 = arith.addf %4, %6 : vector<256x32xf32>
    %8 = vector.shape_cast %7 : vector<256x32xf32> to vector<1x64x128xf32>
    %c0_6 = arith.constant 0 : index
    %c0_7 = arith.constant 0 : index
    %c0_8 = arith.constant 0 : index
    %9 = vector.load %arg5[%c0_6, %c0_7, %c0_8] : memref<1x64x128xf32, #tpu.memory_space<vmem>>, vector<1x64x128xf32>
    tpu.vector_store %arg5[%c0_6, %c0_7, %c0_8], %8 {strides = array<i32>} : memref<1x64x128xf32, #tpu.memory_space<vmem>>, vector<1x64x128xf32>,
    return
  }
  func.func @transform_0(%arg0: i32, %arg1: i32) -> (i32, i32, i32) {
    %c0_i32 = arith.constant 0 : i32
    %c0_i32_0 = arith.constant 0 : i32
    return %arg0, %c0_i32, %arg1 : i32, i32, i32
  }
  func.func @transform_1(%arg0: i32, %arg1: i32) -> (i32, i32) {
    %c0_i32 = arith.constant 0 : i32
    %c0_i32_0 = arith.constant 0 : i32
    %c0_i32_1 = arith.constant 0 : i32
    return %c0_i32, %c0_i32_0 : i32, i32
  }
  func.func @transform_2(%arg0: i32, %arg1: i32) -> (i32, i32) {
    %c0_i32 = arith.constant 0 : i32
    %c0_i32_0 = arith.constant 0 : i32
    %c0_i32_1 = arith.constant 0 : i32
    return %c0_i32, %c0_i32_0 : i32, i32
  }
  func.func @transform_3(%arg0: i32, %arg1: i32) -> (i32, i32, i32) {
    %c0_i32 = arith.constant 0 : i32
    %c0_i32_0 = arith.constant 0 : i32
    return %arg0, %arg1, %c0_i32 : i32, i32, i32
  }
}

module attributes {stable_mosaic.version = 11 : i64} {
  func.func @_mlp_kernel(%arg0: i32, %arg1: i32, %arg2: memref<1x64x256xf32, #tpu.memory_space<vmem>>, %arg3: memref<64x32xbf16, #tpu.memory_space<vmem>>, %arg4: memref<1x32xf32, #tpu.memory_space<vmem>>, %arg5: memref<1x256x32xf32, #tpu.memory_space<vmem>>) attributes {dimension_semantics = [#tpu.dimension_semantics<parallel>, #tpu.dimension_semantics<parallel>], iteration_bounds = array<i64: 2, 1>, scalar_prefetch = 0 : i64, scratch_operands = 0 : i64, tpu.core_type = #tpu.core_type<tc>, window_params = [{transform_indices = @transform_0, window_bounds = array<i64: 1, 64, 256>}, {pipeline_mode = #tpu.pipeline_mode<synchronous>, transform_indices = @transform_1, window_bounds = array<i64: 64, 32>}, {pipeline_mode = #tpu.pipeline_mode<synchronous>, transform_indices = @transform_2, window_bounds = array<i64: 1, 32>}, {transform_indices = @transform_3, window_bounds = array<i64: 1, 256, 32>}]} {
    %c0 = arith.constant 0 : index
    %c0_0 = arith.constant 0 : index
    %c0_1 = arith.constant 0 : index
    %0 = vector.load %arg2[%c0, %c0_0, %c0_1] : memref<1x64x256xf32, #tpu.memory_space<vmem>>, vector<1x64x256xf32>
    %1 = vector.shape_cast %0 : vector<1x64x256xf32> to vector<64x256xf32>
    %2 = arith.truncf %1 : vector<64x256xf32> to vector<64x256xbf16>
    %c0_2 = arith.constant 0 : index
    %c0_3 = arith.constant 0 : index
    %3 = vector.load %arg3[%c0_2, %c0_3] : memref<64x32xbf16, #tpu.memory_space<vmem>>, vector<64x32xbf16>
    %cst = arith.constant dense<0.000000e+00> : vector<256x32xf32>
    %4 = tpu.matmul %2, %3, %cst {dimension_numbers = #tpu.dot_dimension_numbers<[0], [0], [1], [1], [0, 1, 1, 1], [], []>} : vector<64x256xbf16>, vector<64x32xbf16>, vector<256x32xf32> -> vector<256x32xf32>
    %c0_4 = arith.constant 0 : index
    %c0_5 = arith.constant 0 : index
    %5 = vector.load %arg4[%c0_4, %c0_5] : memref<1x32xf32, #tpu.memory_space<vmem>>, vector<1x32xf32>
    %6 = vector.broadcast %5 : vector<1x32xf32> to vector<256x32xf32>
    %7 = arith.addf %4, %6 : vector<256x32xf32>
    %8 = vector.shape_cast %7 : vector<256x32xf32> to vector<1x256x32xf32>
    %c0_6 = arith.constant 0 : index
    %c0_7 = arith.constant 0 : index
    %c0_8 = arith.constant 0 : index
    %9 = vector.load %arg5[%c0_6, %c0_7, %c0_8] : memref<1x256x32xf32, #tpu.memory_space<vmem>>, vector<1x256x32xf32>
    tpu.vector_store %arg5[%c0_6, %c0_7, %c0_8], %8 {strides = array<i32>} : memref<1x256x32xf32, #tpu.memory_space<vmem>>, vector<1x256x32xf32>,
    return
  }
  func.func @transform_0(%arg0: i32, %arg1: i32) -> (i32, i32, i32) {
    %c0_i32 = arith.constant 0 : i32
    %c0_i32_0 = arith.constant 0 : i32
    return %arg0, %c0_i32, %arg1 : i32, i32, i32
  }
  func.func @transform_1(%arg0: i32, %arg1: i32) -> (i32, i32) {
    %c0_i32 = arith.constant 0 : i32
    %c0_i32_0 = arith.constant 0 : i32
    %c0_i32_1 = arith.constant 0 : i32
    return %c0_i32, %c0_i32_0 : i32, i32
  }
  func.func @transform_2(%arg0: i32, %arg1: i32) -> (i32, i32) {
    %c0_i32 = arith.constant 0 : i32
    %c0_i32_0 = arith.constant 0 : i32
    %c0_i32_1 = arith.constant 0 : i32
    return %c0_i32, %c0_i32_0 : i32, i32
  }
  func.func @transform_3(%arg0: i32, %arg1: i32) -> (i32, i32, i32) {
    %c0_i32 = arith.constant 0 : i32
    %c0_i32_0 = arith.constant 0 : i32
    return %arg0, %arg1, %c0_i32 : i32, i32, i32
  }
}

</mosaic_0001>

<llo_original>
// kernel: tpu_custom_call.1
$region0: #{tpu_custom_call.1}
  #allocation0 [shape = 'u32[]', space=smem, size = 0x4, offset = 0x4, fixed_abs, tag = 'smem constant byte address 0x4 - core index']
  #allocation1 [shape = 'u32[144,128]{1,0:T(1,128)}', space=vmem, size = 0x12000, scoped, tag = 'internal scratch']
  %s0 = inlined_call_operand.hbm [shape: f32[2,64,256], index: 0, kind: input, shape index: {}]
  %s1 = inlined_call_operand.vmem [shape: bf16[64,32], index: 1, kind: input, shape index: {}]
  %s2 = inlined_call_operand.vmem [shape: f32[1,32], index: 2, kind: input, shape index: {}]
  %s3 = inlined_call_operand.vmem [shape: f32[2,256,32], index: 3, kind: output, shape index: {}]
  %s4 = sld [smem:[#allocation0]]
  $region49: #{tpu_custom_call.1} parent=0
    _
  %s6 = ssub.s32 1, %s4
  %s7 = scalar_select 0, %s6, %s4
  $region1: #{tpu_custom_call.1} parent=0
    #allocation2 [shape = 'u8[131072]{0}', space=vmem, size = 0x20000, scoped, tag = 'input window, operand 0']
    #allocation3 [shape = 's32[2]{0}', space=sflag, size = 0x8, scoped, tag = 'scoped memory for tpu_custom_call.1']
    %8 = vsyncpa [#allocation3], 0
    %s9 = scalar_lea.sflag [#allocation3], 1
    %10 = vsyncpa %s9, 0
    loop: start=0, step=1, limit=4
    $region2: #{tpu_custom_call.1} parent=1 // loop_pre_header
      _
    $region3: #{tpu_custom_call.1} parent=1 // loop_header
      %s12 = sphi 0, %s16
      %p13 = scmp.ge.s32.totalorder %s12, 4
      %s19 = sphi 0, %s31
      %s20 = sphi 0, %s27
      %s21 = sphi 0, %s19
      %s22 = sphi 0, %s20
      %s23 = sphi 0, %s21
      %s24 = sphi 0, %s22
      %s36 = sphi 0, %s38
      %s39 = sphi 0, %s36
      %s40 = sphi 0, %s39
      %s56 = sphi 0, %s40
      %s60 = sphi 0, %s60
      %s62 = sphi 0, %s60
      %s63 = sphi 0, %s62
      %s77 = sphi 0, %s63
      %s81 = sphi 0, %s81
      %s83 = sphi 0, %s81
      %s84 = sphi 0, %s83
      %s98 = sphi 0, %s84
      %s106 = sphi 0, %s108
      %s109 = sphi 0, %s106
      %s110 = sphi 0, %s109
      %s126 = sphi 0, %s110
    $region4: #{tpu_custom_call.1} parent=1 // loop_header_branch
      %15 = sbr.rel (%p13) target = $region8
    $region5: #{tpu_custom_call.1} parent=1 // loop_body
      %s17 = ssub.s32 %s12, 1
      %s18 = ssub.s32 %s12, 2
      %s25 = sadd.s32 1, %s20
      %p26 = scmp.ge.s32.totalorder %s25, 1
      %s27 = scalar_select %p26, 0, %s25
      %s28 = sadd.s32 1, %s19
      %s29 = scalar_select %p26, %s28, %s19
      %p30 = scmp.ge.s32.totalorder %s29, 2
      %s31 = scalar_select %p30, 0, %s29
      %s32 = ssub.s32 %s19, %s31
      %s33 = ssub.s32 %s20, %s27
      %s34 = sor.u32 %s32, %s33
      %p35 = scmp.eq.s32.totalorder %s34, 0
      %s37 = sadd.s32 %s36, 1
      %s38 = scalar_select %p35, %s36, %s37
      %p41 = pneg %p35
      %p42 = scmp.eq.s32.totalorder %s12, 1
      %p43 = por %p41, %p42
      %p44 = scmp.ne.s32.totalorder %s36, %s39
      %p45 = scmp.eq.s32.totalorder %s12, 0
      %p46 = por %p44, %p45
      %p47 = scmp.ne.s32.totalorder %s36, %s39
      %p48 = scmp.eq.s32.totalorder %s17, 1
      %p49 = por %p47, %p48
      %p50 = scmp.ne.s32.totalorder %s39, %s40
      %p51 = scmp.eq.s32.totalorder %s17, 0
      %p52 = por %p50, %p51
      %p53 = scmp.ne.s32.totalorder %s39, %s40
      %p54 = scmp.eq.s32.totalorder %s18, 1
      %p55 = por %p53, %p54
      %p57 = scmp.ne.s32.totalorder %s40, %s56
      %p58 = scmp.eq.s32.totalorder %s18, 0
      %p59 = por %p57, %p58
      %s61 = sadd.s32 %s60, 1
      %p64 = scmp.eq.s32.totalorder %s12, 1
      %p65 = scmp.ne.s32.totalorder %s60, %s62
      %p66 = scmp.eq.s32.totalorder %s12, 0
      %p67 = por %p65, %p66
      %p68 = scmp.ne.s32.totalorder %s60, %s62
      %p69 = scmp.eq.s32.totalorder %s17, 1
      %p70 = por %p68, %p69
      %p71 = scmp.ne.s32.totalorder %s62, %s63
      %p72 = scmp.eq.s32.totalorder %s17, 0
      %p73 = por %p71, %p72
      %p74 = scmp.ne.s32.totalorder %s62, %s63
      %p75 = scmp.eq.s32.totalorder %s18, 1
      %p76 = por %p74, %p75
      %p78 = scmp.ne.s32.totalorder %s63, %s77
      %p79 = scmp.eq.s32.totalorder %s18, 0
      %p80 = por %p78, %p79
      %s82 = sadd.s32 %s81, 1
      %p85 = scmp.eq.s32.totalorder %s12, 1
      %p86 = scmp.ne.s32.totalorder %s81, %s83
      %p87 = scmp.eq.s32.totalorder %s12, 0
      %p88 = por %p86, %p87
      %p89 = scmp.ne.s32.totalorder %s81, %s83
      %p90 = scmp.eq.s32.totalorder %s17, 1
      %p91 = por %p89, %p90
      %p92 = scmp.ne.s32.totalorder %s83, %s84
      %p93 = scmp.eq.s32.totalorder %s17, 0
      %p94 = por %p92, %p93
      %p95 = scmp.ne.s32.totalorder %s83, %s84
      %p96 = scmp.eq.s32.totalorder %s18, 1
      %p97 = por %p95, %p96
      %p99 = scmp.ne.s32.totalorder %s84, %s98
      %p100 = scmp.eq.s32.totalorder %s18, 0
      %p101 = por %p99, %p100
      %s102 = ssub.s32 %s19, %s31
      %s103 = ssub.s32 %s20, %s27
      %s104 = sor.u32 %s102, %s103
      %p105 = scmp.eq.s32.totalorder %s104, 0
      %s107 = sadd.s32 %s106, 1
      %s108 = scalar_select %p105, %s106, %s107
      %p111 = pneg %p105
      %p112 = scmp.eq.s32.totalorder %s12, 1
      %p113 = por %p111, %p112
      %p114 = scmp.ne.s32.totalorder %s106, %s109
      %p115 = scmp.eq.s32.totalorder %s12, 0
      %p116 = por %p114, %p115
      %p117 = scmp.ne.s32.totalorder %s106, %s109
      %p118 = scmp.eq.s32.totalorder %s17, 1
      %p119 = por %p117, %p118
      %p120 = scmp.ne.s32.totalorder %s109, %s110
      %p121 = scmp.eq.s32.totalorder %s17, 0
      %p122 = por %p120, %p121
      %p123 = scmp.ne.s32.totalorder %s109, %s110
      %p124 = scmp.eq.s32.totalorder %s18, 1
      %p125 = por %p123, %p124
      %p127 = scmp.ne.s32.totalorder %s110, %s126
      %p128 = scmp.eq.s32.totalorder %s18, 0
      %p129 = por %p127, %p128
      %p130 = scmp.le.s32.totalorder 1, %s12
      %p131 = scmp.lt.s32.totalorder %s12, 3
      %p132 = pnand %p130, %p131
      %p133 = pneg %p132
      // Predicated region
      $region9: #{tpu_custom_call.1} parent=5 // pred_check
        _
      $region10: #{tpu_custom_call.1} parent=5 // pred_check_branch
        %135 = sbr.rel (%p132) target = $region12
      $region11: #{tpu_custom_call.1} parent=5 // pred_region
        %s136 = ssub.s32 %s12, 1
        // Predicated region
        $region13: #{tpu_custom_call.1} parent=11 // pred_check
          %p137 = pneg %p73
        $region14: #{tpu_custom_call.1} parent=11 // pred_check_branch
          %139 = sbr.rel (%p137) target = $region16
        $region15: #{tpu_custom_call.1} parent=11 // pred_region
          _
        $region16: #{tpu_custom_call.1} parent=11 // pred_fallthru
          _
        // Predicated region
        $region17: #{tpu_custom_call.1} parent=11 // pred_check
          %p140 = pneg %p94
        $region18: #{tpu_custom_call.1} parent=11 // pred_check_branch
          %142 = sbr.rel (%p140) target = $region20
        $region19: #{tpu_custom_call.1} parent=11 // pred_region
          _
        $region20: #{tpu_custom_call.1} parent=11 // pred_fallthru
          _
      $region12: #{tpu_custom_call.1} parent=5 // pred_fallthru
        _
      %p143 = scmp.lt.s32.totalorder %s12, 2
      // Predicated region
      $region21: #{tpu_custom_call.1} parent=5 // pred_check
        %p144 = pneg %p143
      $region22: #{tpu_custom_call.1} parent=5 // pred_check_branch
        %146 = sbr.rel (%p144) target = $region24
      $region23: #{tpu_custom_call.1} parent=5 // pred_region
        // Predicated region
        $region25: #{tpu_custom_call.1} parent=23 // pred_check
          %p147 = pneg %p46
        $region26: #{tpu_custom_call.1} parent=23 // pred_check_branch
          %149 = sbr.rel (%p147) target = $region28
        $region27: #{tpu_custom_call.1} parent=23 // pred_region
          %s150 = sand.u32 %s36, 1
          %s151 = scalar_lea.sflag [#allocation3], %s150
          %s152 = sand.u32 %s36, 1
          %s153 = smul.addr %s152, 128
          %s154 = scalar_lea.vmem [#allocation2], %s153
          %s155 = smul.u32 2, %s20
          %s157 = ssub.s32 2048, 2048
          %158 = vsyncadd %s151, %s157
          %s159 = smul.addr %s19, 16
          %s160 = sadd.s32 %s155, %s159
          %s161 = smul.addr %s160, 128
          %s162 = scalar_lea.hbm %s0, %s161
          %s163 = sshll.u32 %s154, 4
          %s164 = int_to_ptr.vmem [resolvable:$true] %s163
          %169 = dma.hbm_to_vmem [thread:$0]  %s162, 2048, %s164, %s151, 256, 256, 16
        $region28: #{tpu_custom_call.1} parent=23 // pred_fallthru
          _
      $region24: #{tpu_custom_call.1} parent=5 // pred_fallthru
        _
      %p170 = scmp.le.s32.totalorder 1, %s12
      %p171 = scmp.lt.s32.totalorder %s12, 3
      %p172 = pnand %p170, %p171
      %p173 = pneg %p172
      // Predicated region
      $region29: #{tpu_custom_call.1} parent=5 // pred_check
        _
      $region30: #{tpu_custom_call.1} parent=5 // pred_check_branch
        %175 = sbr.rel (%p172) target = $region32
      $region31: #{tpu_custom_call.1} parent=5 // pred_region
        %s176 = ssub.s32 %s12, 1
        %s177 = sand.u32 %s39, 1
        %s178 = scalar_lea.sflag [#allocation3], %s177
        %s179 = sand.u32 %s39, 1
        %s180 = smul.addr %s179, 128
        %s181 = scalar_lea.vmem [#allocation2], %s180
        // Predicated region
        $region33: #{tpu_custom_call.1} parent=31 // pred_check
          %p182 = pneg %p52
        $region34: #{tpu_custom_call.1} parent=31 // pred_check_branch
          %184 = sbr.rel (%p182) target = $region36
        $region35: #{tpu_custom_call.1} parent=31 // pred_region
          %185 = dma.done %s178, 2048
        $region36: #{tpu_custom_call.1} parent=31 // pred_fallthru
          _
        %s186 = sand.u32 %s39, 1
        %s187 = scalar_lea.sflag [#allocation3], %s186
        %s188 = sand.u32 %s39, 1
        %s189 = smul.addr %s188, 128
        %s190 = scalar_lea.vmem [#allocation2], %s189
        %p191 = pneg %p52
        %p192 = pneg %p49
        %p193 = pneg %p73
        %p194 = pneg %p70
        %p195 = pneg %p94
        %p196 = pneg %p91
        %p197 = pneg %p122
        %p198 = pneg %p119
        %s199 = smul.u32 32, %s22
        %p200 = scmp.lt.s32.totalorder %s21, 1
        %s201 = scalar_select %p200, %s21, 1
        %p202 = scmp.lt.s32.totalorder %s199, 31
        %s203 = scalar_select %p202, %s199, 31
        %s204 = smul.addr %s201, 32
        %s205 = sadd.s32 %s203, %s204
        %s206 = smul.addr %s205, 8
        %s207 = scalar_lea.vmem %s3, %s206
        %s208 = smul.u32 2, %s22
        %s209 = smul.u32 32, %s22
        %p210 = scmp.lt.s32.totalorder %s21, 1
        %s211 = scalar_select %p210, %s21, 1
        %p212 = scmp.lt.s32.totalorder %s209, 31
        %s213 = scalar_select %p212, %s209, 31
        %s214 = smul.addr %s211, 32
        %s215 = sadd.s32 %s213, %s214
        %s216 = smul.addr %s215, 8
        %s217 = scalar_lea.vmem %s3, %s216
        %s218 = smul.u32 32, %s22
        %v220 = vld [vmem:[%s181] sm:$0xff]
        %v221 = vld [vmem:[%s181 + $0x8] sm:$0xff]
        %v222 = vld [vmem:[%s181 + $0x10] sm:$0xff]
        %v223 = vld [vmem:[%s181 + $0x18] sm:$0xff]
        %v224 = vld [vmem:[%s181 + $0x20] sm:$0xff]
        %v225 = vld [vmem:[%s181 + $0x28] sm:$0xff]
        %v226 = vld [vmem:[%s181 + $0x30] sm:$0xff]
        %v227 = vld [vmem:[%s181 + $0x38] sm:$0xff]
        %v228 = vld [vmem:[%s181 + $0x40] sm:$0xff]
        %v229 = vld [vmem:[%s181 + $0x48] sm:$0xff]
        %v230 = vld [vmem:[%s181 + $0x50] sm:$0xff]
        %v231 = vld [vmem:[%s181 + $0x58] sm:$0xff]
        %v232 = vld [vmem:[%s181 + $0x60] sm:$0xff]
        %v233 = vld [vmem:[%s181 + $0x68] sm:$0xff]
        %v234 = vld [vmem:[%s181 + $0x70] sm:$0xff]
        %v235 = vld [vmem:[%s181 + $0x78] sm:$0xff]
        %v236 = vpack.c.bf16 %v222, %v220
        %v237 = vpack.c.bf16 %v223, %v221
        %v238 = vpack.c.bf16 %v226, %v224
        %v239 = vpack.c.bf16 %v227, %v225
        %v240 = vpack.c.bf16 %v230, %v228
        %v241 = vpack.c.bf16 %v231, %v229
        %v242 = vpack.c.bf16 %v234, %v232
        %v243 = vpack.c.bf16 %v235, %v233
        %v244 = vld [vmem:[%s1] sm:$0xf]
        %v245 = vld [vmem:[%s1 + $0x4] sm:$0xf]
        %v246 = vld [vmem:[%s1 + $0x8] sm:$0xf]
        %v247 = vld [vmem:[%s1 + $0xc] sm:$0xf]
        %v248 = vld [vmem:[%s1 + $0x10] sm:$0xf]
        %v249 = vld [vmem:[%s1 + $0x14] sm:$0xf]
        %v250 = vld [vmem:[%s1 + $0x18] sm:$0xf]
        %v251 = vld [vmem:[%s1 + $0x1c] sm:$0xf]
        %v252 = vld [vmem:[%s2] sm:$0x1]
        %v254 = vlaneseq
        %v255 = vshrl.u32 %v254, 7
        %v256 = vsub.s32 0, %v255
        %v257 = vrot.slane %v252, %v256
        %259 = vxpose.xlu0.c.b16.start [1/8] %v236, 128
        %260 = vxpose.xlu0.c.b16.cont [2/8] %v238, 128
        %261 = vxpose.xlu0.c.b16.cont [3/8] %v240, 128
        %262 = vxpose.xlu0.c.b16.cont [4/8] %v242, 128
        %263 = vxpose.xlu0.c.b16.cont [5/8] 0, 128
        %264 = vxpose.xlu0.c.b16.cont [6/8] 0, 128
        %265 = vxpose.xlu0.c.b16.cont [7/8] 0, 128
        %266 = vxpose.xlu0.c.b16.end [8/8] 0, 128
        %v267 = vpop.trf.xlu0
        %v268 = vpop.trf.xlu0
        %v269 = vpop.trf.xlu0
        %v270 = vpop.trf.xlu0
        %v271 = vpop.trf.xlu0
        %v272 = vpop.trf.xlu0
        %v273 = vpop.trf.xlu0
        %v274 = vpop.trf.xlu0
        %275 = vxpose.xlu0.c.b16.start [1/8] %v237, 128
        %276 = vxpose.xlu0.c.b16.cont [2/8] %v239, 128
        %277 = vxpose.xlu0.c.b16.cont [3/8] %v241, 128
        %278 = vxpose.xlu0.c.b16.cont [4/8] %v243, 128
        %279 = vxpose.xlu0.c.b16.cont [5/8] 0, 128
        %280 = vxpose.xlu0.c.b16.cont [6/8] 0, 128
        %281 = vxpose.xlu0.c.b16.cont [7/8] 0, 128
        %282 = vxpose.xlu0.c.b16.end [8/8] 0, 128
        %v283 = vpop.trf.xlu0
        %v284 = vpop.trf.xlu0
        %v285 = vpop.trf.xlu0
        %v286 = vpop.trf.xlu0
        %v287 = vpop.trf.xlu0
        %v288 = vpop.trf.xlu0
        %v289 = vpop.trf.xlu0
        %v290 = vpop.trf.xlu0
        %v299 = vunpack.c.l.b16 %v244
        %v300 = vunpack.c.l.b16 %v245
        %v301 = vunpack.c.l.b16 %v246
        %v302 = vunpack.c.l.b16 %v247
        %v303 = vunpack.c.l.b16 %v248
        %v304 = vunpack.c.l.b16 %v249
        %v305 = vunpack.c.l.b16 %v250
        %v306 = vunpack.c.l.b16 %v251
        %v307 = vpack.c.b16 %v300, %v299
        %v308 = vpack.c.b16 %v302, %v301
        %v309 = vpack.c.b16 %v304, %v303
        %v310 = vpack.c.b16 %v306, %v305
        %vm315 = vcmask 523264
        %v317 = vsel %vm315, %v267, 0
        %v320 = vsel %vm315, %v268, 0
        %v323 = vsel %vm315, %v269, 0
        %v326 = vsel %vm315, %v270, 0
        %v329 = vsel %vm315, %v271, 0
        %v332 = vsel %vm315, %v272, 0
        %v335 = vsel %vm315, %v273, 0
        %v338 = vsel %vm315, %v274, 0
        %v341 = vsel %vm315, %v283, 0
        %v344 = vsel %vm315, %v284, 0
        %v347 = vsel %vm315, %v285, 0
        %v350 = vsel %vm315, %v286, 0
        %v353 = vsel %vm315, %v287, 0
        %v356 = vsel %vm315, %v288, 0
        %v359 = vsel %vm315, %v289, 0
        %v362 = vsel %vm315, %v290, 0
        %364 = vmatprep.subr.bf16.mxu0 0
        %365 = vmatpush1.bf16.msra.mxu0 0
        %366 = vmatprep.subr.bf16.mxu0 0
        %367 = vmatpush1.bf16.msra.mxu0 0
        %368 = vmatprep.subr.bf16.mxu0 0
        %369 = vmatpush1.bf16.msra.mxu0 0
        %370 = vmatprep.subr.bf16.mxu0 0
        %371 = vmatpush1.bf16.msra.mxu0 0
        %372 = vmatprep.subr.bf16.mxu0 0
        %373 = vmatpush1.bf16.msra.mxu0 %v310
        %374 = vmatprep.subr.bf16.mxu0 0
        %375 = vmatpush1.bf16.msra.mxu0 %v309
        %376 = vmatprep.subr.bf16.mxu0 0
        %377 = vmatpush1.bf16.msra.mxu0 %v308
        %378 = vmatprep.subr.bf16.mxu0 0
        %379 = vmatpush1.bf16.msra.mxu0 %v307
        %380 = vmatprep.subr.bf16.mxu0 0
        %381 = vmatpush2.bf16.msra.mxu0 0
        %382 = vmatprep.subr.bf16.mxu0 0
        %383 = vmatpush2.bf16.msra.mxu0 0
        %384 = vmatprep.subr.bf16.mxu0 0
        %385 = vmatpush2.bf16.msra.mxu0 0
        %386 = vmatprep.subr.bf16.mxu0 0
        %387 = vmatpush2.bf16.msra.mxu0 0
        %388 = vmatprep.subr.bf16.mxu0 0
        %389 = vmatpush2.bf16.msra.mxu0 0
        %390 = vmatprep.subr.bf16.mxu0 0
        %391 = vmatpush2.bf16.msra.mxu0 0
        %392 = vmatprep.subr.bf16.mxu0 0
        %393 = vmatpush2.bf16.msra.mxu0 0
        %394 = vmatprep.subr.bf16.mxu0 0
        %395 = vmatpush2.bf16.msra.mxu0 0
        %396 = vmatprep.mubr.bf16.mxu0 0
        %397 = vmatmul.mubr.bf16.gmra.mxu0 %v317
        %v398 = vpop.f32.mrf.mxu0
        %v399 = vadd.f32 %v257, %v398
        %v400 = vpop.f32.mrf.mxu0
        %v401 = vpop.f32.mrf.mxu0
        %v402 = vadd.f32 %v257, %v401
        %v403 = vpop.f32.mrf.mxu0
        %404 = vmatprep.mubr.bf16.mxu0 0
        %405 = vmatmul.mubr.bf16.gmra.mxu0 %v320
        %v406 = vpop.f32.mrf.mxu0
        %v407 = vadd.f32 %v257, %v406
        %v408 = vpop.f32.mrf.mxu0
        %v409 = vpop.f32.mrf.mxu0
        %v410 = vadd.f32 %v257, %v409
        %v411 = vpop.f32.mrf.mxu0
        %412 = vmatprep.mubr.bf16.mxu0 0
        %413 = vmatmul.mubr.bf16.gmra.mxu0 %v323
        %v414 = vpop.f32.mrf.mxu0
        %v415 = vadd.f32 %v257, %v414
        %v416 = vpop.f32.mrf.mxu0
        %v417 = vpop.f32.mrf.mxu0
        %v418 = vadd.f32 %v257, %v417
        %v419 = vpop.f32.mrf.mxu0
        %420 = vmatprep.mubr.bf16.mxu0 0
        %421 = vmatmul.mubr.bf16.gmra.mxu0 %v326
        %v422 = vpop.f32.mrf.mxu0
        %v423 = vadd.f32 %v257, %v422
        %v424 = vpop.f32.mrf.mxu0
        %v425 = vpop.f32.mrf.mxu0
        %v426 = vadd.f32 %v257, %v425
        %v427 = vpop.f32.mrf.mxu0
        %428 = vmatprep.mubr.bf16.mxu0 0
        %429 = vmatmul.mubr.bf16.gmra.mxu0 %v329
        %v430 = vpop.f32.mrf.mxu0
        %v431 = vadd.f32 %v257, %v430
        %v432 = vpop.f32.mrf.mxu0
        %v433 = vpop.f32.mrf.mxu0
        %v434 = vadd.f32 %v257, %v433
        %v435 = vpop.f32.mrf.mxu0
        %436 = vmatprep.mubr.bf16.mxu0 0
        %437 = vmatmul.mubr.bf16.gmra.mxu0 %v332
        %v438 = vpop.f32.mrf.mxu0
        %v439 = vadd.f32 %v257, %v438
        %v440 = vpop.f32.mrf.mxu0
        %v441 = vpop.f32.mrf.mxu0
        %v442 = vadd.f32 %v257, %v441
        %v443 = vpop.f32.mrf.mxu0
        %444 = vmatprep.mubr.bf16.mxu0 0
        %445 = vmatmul.mubr.bf16.gmra.mxu0 %v335
        %v446 = vpop.f32.mrf.mxu0
        %v447 = vadd.f32 %v257, %v446
        %v448 = vpop.f32.mrf.mxu0
        %v449 = vpop.f32.mrf.mxu0
        %v450 = vadd.f32 %v257, %v449
        %v451 = vpop.f32.mrf.mxu0
        %452 = vmatprep.mubr.bf16.mxu0 0
        %453 = vmatmul.mubr.bf16.gmra.mxu0 %v338
        %v454 = vpop.f32.mrf.mxu0
        %v455 = vadd.f32 %v257, %v454
        %v456 = vpop.f32.mrf.mxu0
        %v457 = vpop.f32.mrf.mxu0
        %v458 = vadd.f32 %v257, %v457
        %v459 = vpop.f32.mrf.mxu0
        %460 = vmatprep.mubr.bf16.mxu0 0
        %461 = vmatmul.mubr.bf16.gmra.mxu0 %v341
        %v462 = vpop.f32.mrf.mxu0
        %v463 = vadd.f32 %v257, %v462
        %v464 = vpop.f32.mrf.mxu0
        %v465 = vpop.f32.mrf.mxu0
        %v466 = vadd.f32 %v257, %v465
        %v467 = vpop.f32.mrf.mxu0
        %468 = vmatprep.mubr.bf16.mxu0 0
        %469 = vmatmul.mubr.bf16.gmra.mxu0 %v344
        %v470 = vpop.f32.mrf.mxu0
        %v471 = vadd.f32 %v257, %v470
        %v472 = vpop.f32.mrf.mxu0
        %v473 = vpop.f32.mrf.mxu0
        %v474 = vadd.f32 %v257, %v473
        %v475 = vpop.f32.mrf.mxu0
        %476 = vmatprep.mubr.bf16.mxu0 0
        %477 = vmatmul.mubr.bf16.gmra.mxu0 %v347
        %v478 = vpop.f32.mrf.mxu0
        %v479 = vadd.f32 %v257, %v478
        %v480 = vpop.f32.mrf.mxu0
        %v481 = vpop.f32.mrf.mxu0
        %v482 = vadd.f32 %v257, %v481
        %v483 = vpop.f32.mrf.mxu0
        %484 = vmatprep.mubr.bf16.mxu0 0
        %485 = vmatmul.mubr.bf16.gmra.mxu0 %v350
        %v486 = vpop.f32.mrf.mxu0
        %v487 = vadd.f32 %v257, %v486
        %v488 = vpop.f32.mrf.mxu0
        %v489 = vpop.f32.mrf.mxu0
        %v490 = vadd.f32 %v257, %v489
        %v491 = vpop.f32.mrf.mxu0
        %492 = vmatprep.mubr.bf16.mxu0 0
        %493 = vmatmul.mubr.bf16.gmra.mxu0 %v353
        %v494 = vpop.f32.mrf.mxu0
        %v495 = vadd.f32 %v257, %v494
        %v496 = vpop.f32.mrf.mxu0
        %v497 = vpop.f32.mrf.mxu0
        %v498 = vadd.f32 %v257, %v497
        %v499 = vpop.f32.mrf.mxu0
        %500 = vmatprep.mubr.bf16.mxu0 0
        %501 = vmatmul.mubr.bf16.gmra.mxu0 %v356
        %v502 = vpop.f32.mrf.mxu0
        %v503 = vadd.f32 %v257, %v502
        %v504 = vpop.f32.mrf.mxu0
        %v505 = vpop.f32.mrf.mxu0
        %v506 = vadd.f32 %v257, %v505
        %v507 = vpop.f32.mrf.mxu0
        %508 = vmatprep.mubr.bf16.mxu0 0
        %509 = vmatmul.mubr.bf16.gmra.mxu0 %v359
        %v510 = vpop.f32.mrf.mxu0
        %v511 = vadd.f32 %v257, %v510
        %v512 = vpop.f32.mrf.mxu0
        %v513 = vpop.f32.mrf.mxu0
        %v514 = vadd.f32 %v257, %v513
        %v515 = vpop.f32.mrf.mxu0
        %516 = vmatprep.mubr.bf16.mxu0 0
        %517 = vmatmul.mubr.bf16.gmra.mxu0 %v362
        %v518 = vpop.f32.mrf.mxu0
        %v519 = vadd.f32 %v257, %v518
        %v520 = vpop.f32.mrf.mxu0
        %v521 = vpop.f32.mrf.mxu0
        %v522 = vadd.f32 %v257, %v521
        %v523 = vpop.f32.mrf.mxu0
        %524 = vdwg.mxu0
        %vm525 = vcmask 261120
        %526 = vst.msk [vmem:[%s217] sm:$0xff] %vm525, %v399
        %527 = vst.msk [vmem:[%s217 + $0x8] sm:$0xff] %vm525, %v402
        %528 = vst.msk [vmem:[%s217 + $0x10] sm:$0xff] %vm525, %v407
        %529 = vst.msk [vmem:[%s217 + $0x18] sm:$0xff] %vm525, %v410
        %530 = vst.msk [vmem:[%s217 + $0x20] sm:$0xff] %vm525, %v415
        %531 = vst.msk [vmem:[%s217 + $0x28] sm:$0xff] %vm525, %v418
        %532 = vst.msk [vmem:[%s217 + $0x30] sm:$0xff] %vm525, %v423
        %533 = vst.msk [vmem:[%s217 + $0x38] sm:$0xff] %vm525, %v426
        %534 = vst.msk [vmem:[%s217 + $0x40] sm:$0xff] %vm525, %v431
        %535 = vst.msk [vmem:[%s217 + $0x48] sm:$0xff] %vm525, %v434
        %536 = vst.msk [vmem:[%s217 + $0x50] sm:$0xff] %vm525, %v439
        %537 = vst.msk [vmem:[%s217 + $0x58] sm:$0xff] %vm525, %v442
        %538 = vst.msk [vmem:[%s217 + $0x60] sm:$0xff] %vm525, %v447
        %539 = vst.msk [vmem:[%s217 + $0x68] sm:$0xff] %vm525, %v450
        %540 = vst.msk [vmem:[%s217 + $0x70] sm:$0xff] %vm525, %v455
        %541 = vst.msk [vmem:[%s217 + $0x78] sm:$0xff] %vm525, %v458
        %542 = vst.msk [vmem:[%s217 + $0x80] sm:$0xff] %vm525, %v463
        %543 = vst.msk [vmem:[%s217 + $0x88] sm:$0xff] %vm525, %v466
        %544 = vst.msk [vmem:[%s217 + $0x90] sm:$0xff] %vm525, %v471
        %545 = vst.msk [vmem:[%s217 + $0x98] sm:$0xff] %vm525, %v474
        %546 = vst.msk [vmem:[%s217 + $0xa0] sm:$0xff] %vm525, %v479
        %547 = vst.msk [vmem:[%s217 + $0xa8] sm:$0xff] %vm525, %v482
        %548 = vst.msk [vmem:[%s217 + $0xb0] sm:$0xff] %vm525, %v487
        %549 = vst.msk [vmem:[%s217 + $0xb8] sm:$0xff] %vm525, %v490
        %550 = vst.msk [vmem:[%s217 + $0xc0] sm:$0xff] %vm525, %v495
        %551 = vst.msk [vmem:[%s217 + $0xc8] sm:$0xff] %vm525, %v498
        %552 = vst.msk [vmem:[%s217 + $0xd0] sm:$0xff] %vm525, %v503
        %553 = vst.msk [vmem:[%s217 + $0xd8] sm:$0xff] %vm525, %v506
        %554 = vst.msk [vmem:[%s217 + $0xe0] sm:$0xff] %vm525, %v511
        %555 = vst.msk [vmem:[%s217 + $0xe8] sm:$0xff] %vm525, %v514
        %556 = vst.msk [vmem:[%s217 + $0xf0] sm:$0xff] %vm525, %v519
        %557 = vst.msk [vmem:[%s217 + $0xf8] sm:$0xff] %vm525, %v522
        %s558 = smul.u32 32, %s22
        %p559 = scmp.lt.s32.totalorder %s21, 1
        %s560 = scalar_select %p559, %s21, 1
        %p561 = scmp.lt.s32.totalorder %s558, 31
        %s562 = scalar_select %p561, %s558, 31
        %s563 = smul.addr %s560, 32
        %s564 = sadd.s32 %s562, %s563
        %s565 = smul.addr %s564, 8
        %s566 = scalar_lea.vmem %s3, %s565
        // Predicated region
        $region37: #{tpu_custom_call.1} parent=31 // pred_check
          %p567 = pneg %p119
        $region38: #{tpu_custom_call.1} parent=31 // pred_check_branch
          %569 = sbr.rel (%p567) target = $region40
        $region39: #{tpu_custom_call.1} parent=31 // pred_region
          %s570 = smul.u32 32, %s22
        $region40: #{tpu_custom_call.1} parent=31 // pred_fallthru
          _
      $region32: #{tpu_custom_call.1} parent=5 // pred_fallthru
        _
      %p571 = scmp.le.s32.totalorder 2, %s12
      // Predicated region
      $region41: #{tpu_custom_call.1} parent=5 // pred_check
        %p572 = pneg %p571
      $region42: #{tpu_custom_call.1} parent=5 // pred_check_branch
        %574 = sbr.rel (%p572) target = $region44
      $region43: #{tpu_custom_call.1} parent=5 // pred_region
        %s575 = ssub.s32 %s12, 2
        // Predicated region
        $region45: #{tpu_custom_call.1} parent=43 // pred_check
          %p576 = pneg %p125
        $region46: #{tpu_custom_call.1} parent=43 // pred_check_branch
          %578 = sbr.rel (%p576) target = $region48
        $region47: #{tpu_custom_call.1} parent=43 // pred_region
          %s579 = smul.u32 32, %s24
          %p580 = scmp.lt.s32.totalorder %s23, 1
          %s581 = scalar_select %p580, %s23, 1
          %p582 = scmp.lt.s32.totalorder %s579, 31
          %s583 = scalar_select %p582, %s579, 31
          %s584 = smul.addr %s581, 32
          %s585 = sadd.s32 %s583, %s584
          %s586 = smul.addr %s585, 8
          %s587 = scalar_lea.vmem %s3, %s586
        $region48: #{tpu_custom_call.1} parent=43 // pred_fallthru
          _
      $region44: #{tpu_custom_call.1} parent=5 // pred_fallthru
        _
    $region6: #{tpu_custom_call.1} parent=1 // loop_footer
      %s16 = sadd.s32 1, %s12
    $region7: #{tpu_custom_call.1} parent=1 // loop_footer_branch
      %11 = sbr.rel target = $region3
    $region8: #{tpu_custom_call.1} parent=1 // loop_exit
      _
    %588 = vsyncpa [#allocation3], 1
    %s589 = scalar_lea.sflag [#allocation3], 1
    %590 = vsyncpa %s589, 1

</llo_original>
